<compile_context>
chip_gen: v5e
topology: v5e:2x2
jax: 0.10.0
libtpu: 0.0.40
codegen_flags: <defaults>
</compile_context>

<pallas_src>
import jax
import jax.numpy as jnp
from jax.experimental import pallas as pl
from jax.experimental.pallas import tpu as pltpu

EPS = 1e-5
# Safe scoped-VMEM request across v5e/v6e (128 MiB phys) and v7x (64 MiB phys).
VMEM_LIMIT = 32 * 1024 * 1024


def _round_up(x, m):
    return (x + m - 1) // m * m


def _cdiv(a, b):
    return -(-a // b)


# ---------------------------------------------------------------------------
# Fused matmul kernel:  y = (relu(a * s + t) if prologue else a) @ b
# plus per-column partial sum / sum-of-squares of y (BatchNorm statistics).
# Grid (gm, gn, gk); K innermost ("arbitrary"), M / N "parallel".
# The output block itself is the accumulator (its index_map ignores k).
# ---------------------------------------------------------------------------
def _make_mm_kernel(use_prologue, tm, mask_rows):
    def kernel(*refs):
        if use_prologue:
            a_ref, b_ref, s_ref, t_ref, o_ref, sum_ref, ssq_ref = refs
        else:
            a_ref, b_ref, o_ref, sum_ref, ssq_ref = refs
        k = pl.program_id(2)

        a = a_ref[...]
        if use_prologue:
            a = jnp.maximum(a * s_ref[...] + t_ref[...], 0.0)
        contrib = jnp.dot(a, b_ref[...], preferred_element_type=jnp.float32)

        @pl.when(k == 0)
        def _():
            o_ref[...] = contrib

        @pl.when(k != 0)
        def _():
            o_ref[...] += contrib

        # Epilogue on the last K step: per-column sum / sum-of-squares of this
        # output row-block for the BatchNorm batch statistics.
        @pl.when(k == pl.num_programs(2) - 1)
        def _():
            y = o_ref[...]
            if mask_rows is not None:
                rid = (jax.lax.broadcasted_iota(jnp.int32, (tm, 1), 0)
                       + pl.program_id(0) * tm)
                y = jnp.where(rid < mask_rows, y, 0.0)
            sum_ref[...] = jnp.sum(y, axis=0, keepdims=True)[None]
            ssq_ref[...] = jnp.sum(y * y, axis=0, keepdims=True)[None]

    return kernel


def pallas_matmul_stats(a, b, prologue_scale=None, prologue_shift=None):
    """(M, K) @ (K, N) with optional fused relu(a*s+t) input prologue.

    Returns (y, mean, var): y is the matmul output, mean/var are its
    per-column batch statistics (biased variance) from the fused epilogue.
    K and N are never padded (full-extent blocks); rows are padded to the M
    tile only when necessary and masked out of the statistics.
    """
    M, K = a.shape
    Kb, N = b.shape
    assert K == Kb

    # K: single full-extent block unless K is big and 128-aligned.
    if K % 128 == 0 and K >= 512:
        tk = 256 if K % 256 == 0 else 128
    else:
        tk = K
    gk = K // tk

    # N: single full-extent block unless N is big and 128-aligned.
    if N % 128 == 0 and N > 128:
        tn = 256 if N % 256 == 0 else 128
    else:
        tn = N
    gn = N // tn

    # M: large tiles for HBM roofline, but keep >= 2 parallel blocks so both
    # TensorCores of a dual-TC chip (v7x) get work.
    tm = 512 if M >= 512 else _round_up(M, 8)
    gm = _round_up(M, tm) // tm
    if gm * gn < 2 and M > 8:
        tm = _round_up(max(tm // 2, 8), 8)
        gm = _round_up(M, tm) // tm
    Mp = gm * tm

    a_p = a if Mp == M else jnp.pad(a, ((0, Mp - M), (0, 0)))
    mask_rows = None if Mp == M else M

    use_prologue = prologue_scale is not None
    extra_args, extra_specs = [], []
    if use_prologue:
        extra_args = [prologue_scale, prologue_shift]
        extra_specs = [pl.BlockSpec((1, tk), lambda i, j, k: (0, k)),
                       pl.BlockSpec((1, tk), lambda i, j, k: (0, k))]

    kernel = _make_mm_kernel(use_prologue, tm, mask_rows)

    y, psum, pssq = pl.pallas_call(
        kernel,
        out_shape=(
            jax.ShapeDtypeStruct((Mp, N), jnp.float32),
            jax.ShapeDtypeStruct((gm, 1, N), jnp.float32),
            jax.ShapeDtypeStruct((gm, 1, N), jnp.float32),
        ),
        grid=(gm, gn, gk),
        in_specs=[pl.BlockSpec((tm, tk), lambda i, j, k: (i, k)),
                  pl.BlockSpec((tk, tn), lambda i, j, k: (k, j))] + extra_specs,
        out_specs=(
            pl.BlockSpec((tm, tn), lambda i, j, k: (i, j)),
            pl.BlockSpec((1, 1, tn), lambda i, j, k: (i, 0, j)),
            pl.BlockSpec((1, 1, tn), lambda i, j, k: (i, 0, j)),
        ),
        compiler_params=pltpu.CompilerParams(
            dimension_semantics=("parallel", "parallel", "arbitrary"),
            vmem_limit_bytes=VMEM_LIMIT),
    )(a_p, b, *extra_args)

    col_sum = jnp.sum(psum[:, 0, :], axis=0, keepdims=True)
    col_ssq = jnp.sum(pssq[:, 0, :], axis=0, keepdims=True)
    mean = col_sum / M
    # TODO(synk): E[x^2]-E[x]^2 can cancel for large-mean activations; clamped.
    var = jnp.maximum(col_ssq / M - mean * mean, 0.0)
    y = y if Mp == M else y[:M]
    return y, mean, var


# ---------------------------------------------------------------------------
# Memory-bound elementwise merge kernels (BN3-apply [+ skip-BN-apply] + add +
# ReLU), on a lane-dense repacked layout with >= 2 parallel grid blocks.
# ---------------------------------------------------------------------------
def _merge_affine_relu_kernel(y_ref, s1_ref, t1_ref, r_ref, s2_ref, t2_ref, o_ref):
    o_ref[...] = jnp.maximum(
        y_ref[...] * s1_ref[...] + t1_ref[...]
        + r_ref[...] * s2_ref[...] + t2_ref[...], 0.0)


def _merge_identity_relu_kernel(y_ref, s1_ref, t1_ref, r_ref, o_ref):
    o_ref[...] = jnp.maximum(
        y_ref[...] * s1_ref[...] + t1_ref[...] + r_ref[...], 0.0)


def _lane_dense(mats, bcasts):
    """Repack (M, C) -> (M*C/L, L), L in {512, 256, 128}, when C < 128 so
    stores fill vreg lanes; broadcast rows are tiled to width L."""
    M, C = mats[0].shape
    if C < 128 and C % 128 != 0:
        for L in (512, 256, 128):
            if L % C == 0 and (M * C) % L == 0:
                rows = (M * C) // L
                if rows >= 16 or L == 128:
                    mats = [m.reshape(rows, L) for m in mats]
                    bcasts = [jnp.tile(b, (1, L // C)) for b in bcasts]
                    return mats, bcasts, rows, L
    return mats, bcasts, M, C


def _run_elementwise(kernel, args, rows, cols):
    """args: list of (array, is_row_tiled); row arrays are (rows, cols)."""
    if rows >= 16:
        nblk = max(2, _cdiv(rows, 2048))      # >= 2 blocks for dual-TC chips
        tr = _round_up(_cdiv(rows, nblk), 8)
    else:
        tr = _round_up(rows, 8)
    pr = _round_up(rows, tr)

    in_specs, call_args = [], []
    for arr, is_row in args:
        if is_row:
            if pr != rows:
                arr = jnp.pad(arr, ((0, pr - rows), (0, 0)))
            in_specs.append(pl.BlockSpec((tr, cols), lambda i: (i, 0)))
        else:
            in_specs.append(pl.BlockSpec((1, cols), lambda i: (0, 0)))
        call_args.append(arr)

    out = pl.pallas_call(
        kernel,
        out_shape=jax.ShapeDtypeStruct((pr, cols), jnp.float32),
        grid=(pr // tr,),
        in_specs=in_specs,
        out_specs=pl.BlockSpec((tr, cols), lambda i: (i, 0)),
        compiler_params=pltpu.CompilerParams(
            dimension_semantics=("parallel",),
            vmem_limit_bytes=VMEM_LIMIT),
    )(*call_args)
    return out[:rows] if pr != rows else out


def pallas_merge_affine_relu(y, s1, t1, r, s2, t2):
    M, C = y.shape
    mats, bcasts, rows, cols = _lane_dense([y, r], [s1, t1, s2, t2])
    out = _run_elementwise(
        _merge_affine_relu_kernel,
        [(mats[0], True), (bcasts[0], False), (bcasts[1], False),
         (mats[1], True), (bcasts[2], False), (bcasts[3], False)],
        rows, cols)
    return out.reshape(M, C)


def pallas_merge_identity_relu(y, s1, t1, r):
    M, C = y.shape
    mats, bcasts, rows, cols = _lane_dense([y, r], [s1, t1])
    out = _run_elementwise(
        _merge_identity_relu_kernel,
        [(mats[0], True), (bcasts[0], False), (bcasts[1], False),
         (mats[1], True)],
        rows, cols)
    return out.reshape(M, C)


# ---------------------------------------------------------------------------
# JAX glue
# ---------------------------------------------------------------------------
def bn_scale_shift(mean, var, gamma, beta):
    scale = gamma * jax.lax.rsqrt(var + EPS)
    shift = beta - mean * scale
    return scale, shift


def im2col_3x3(x, stride, pad_vec):
    """x: (N, H, W, C) -> cols (N*Ho*Wo, 9*C), (kh, kw, c) flattening.

    The 3x3 conv's spatial padding uses the per-channel value `pad_vec`
    (chosen as -shift/scale) so that the downstream relu(a*scale+shift)
    prologue maps padded entries to exactly 0.
    """
    N, H, W, C = x.shape
    pv = pad_vec.reshape(1, 1, 1, C)
    row = jnp.broadcast_to(pv, (N, 1, W, C))
    xp = jnp.concatenate([row, x, row], axis=1)
    col = jnp.broadcast_to(pv, (N, H + 2, 1, C))
    xp = jnp.concatenate([col, xp, col], axis=2)
    Ho = (H - 1) // stride + 1
    Wo = (W - 1) // stride + 1
    patches = []
    for dh in range(3):
        for dw in range(3):
            patches.append(
                xp[:, dh:dh + stride * (Ho - 1) + 1:stride,
                      dw:dw + stride * (Wo - 1) + 1:stride, :])
    cols = jnp.stack(patches, axis=3)      # (N, Ho, Wo, 9, C)
    return cols.reshape(N * Ho * Wo, 9 * C), Ho, Wo


def init_params(key, in_channels, out_channels, stride, expansion=4):
    ks = jax.random.split(key, 12)
    c_exp = expansion * out_channels

    def normal(k, shape):
        return 0.1 * jax.random.normal(k, shape, jnp.float32)

    # Weights are created in PyTorch OIHW layout and converted ONCE here to
    # matmul layout (hoisted out of the forward path):
    #   1x1 conv (O,I,1,1) -> (I,O);  3x3 conv (O,I,3,3) -> (9*I, O) in
    #   (kh, kw, ci) row order matching the im2col column order.
    # Conv biases are omitted on purpose: with training-mode BatchNorm right
    # after each conv the bias cancels exactly in (y - mean).
    w1 = normal(ks[0], (out_channels, in_channels, 1, 1))
    w2 = normal(ks[3], (out_channels, out_channels, 3, 3))
    w3 = normal(ks[6], (c_exp, out_channels, 1, 1))
    p = {
        "w1": w1[:, :, 0, 0].T,
        "g1": 1.0 + normal(ks[1], (1, out_channels)),
        "be1": normal(ks[2], (1, out_channels)),
        "w2": jnp.transpose(w2, (2, 3, 1, 0)).reshape(9 * out_channels, out_channels),
        "g2": 1.0 + normal(ks[4], (1, out_channels)),
        "be2": normal(ks[5], (1, out_channels)),
        "w3": w3[:, :, 0, 0].T,
        "g3": 1.0 + normal(ks[7], (1, c_exp)),
        "be3": normal(ks[8], (1, c_exp)),
        "has_skip": (stride != 1) or (in_channels != c_exp),
    }
    if p["has_skip"]:
        ws = normal(ks[9], (c_exp, in_channels, 1, 1))
        p["ws"] = ws[:, :, 0, 0].T
        p["gs"] = 1.0 + normal(ks[10], (1, c_exp))
        p["bes"] = normal(ks[11], (1, c_exp))
    return p


def residual_block2_forward(x_nchw, p, stride, expansion=4):
    # NCHW -> NHWC (see TODO(synk) at top about dropping this transpose)
    x = jnp.transpose(x_nchw, (0, 2, 3, 1)).astype(jnp.float32)
    N, H, W, Cin = x.shape
    Cout = p["w1"].shape[1]
    Cexp = p["w3"].shape[1]
    M1 = N * H * W

    # conv1 (1x1) with fused BN1 statistics; BN1-apply + ReLU is NOT
    # materialized -- it is fused into conv2's A prologue below.
    y1, m1, v1 = pallas_matmul_stats(x.reshape(M1, Cin), p["w1"])
    s1, t1 = bn_scale_shift(m1, v1, p["g1"], p["be1"])

    # conv2 (3x3, stride, pad=1): im2col is built from raw y1; the spatial
    # pad value -t1/s1 makes relu(pad*s1+t1) == 0, so the fused prologue
    # reproduces zero-padded relu(bn1(y1)) exactly.  BN2 stats in epilogue.
    pad_vec = -t1 / jnp.where(s1 == 0.0, 1.0, s1)
    cols, Ho, Wo = im2col_3x3(y1.reshape(N, H, W, Cout), stride, pad_vec)
    y2, m2, v2 = pallas_matmul_stats(
        cols, p["w2"],
        prologue_scale=jnp.tile(s1, (1, 9)), prologue_shift=jnp.tile(t1, (1, 9)))
    s2, t2 = bn_scale_shift(m2, v2, p["g2"], p["be2"])
    M2 = N * Ho * Wo

    # conv3 (1x1): BN2-apply + ReLU fused into the matmul A-prologue,
    # BN3 statistics fused into its epilogue (h2 never hits HBM).
    y3, m3, v3 = pallas_matmul_stats(y2, p["w3"],
                                     prologue_scale=s2, prologue_shift=t2)
    s3, t3 = bn_scale_shift(m3, v3, p["g3"], p["be3"])

    # skip connection + residual merge + final ReLU
    if p["has_skip"]:
        xs = x[:, ::stride, ::stride, :].reshape(M2, Cin)
        ys, ms, vs = pallas_matmul_stats(xs, p["ws"])
        ss, ts = bn_scale_shift(ms, vs, p["gs"], p["bes"])
        out = pallas_merge_affine_relu(y3, s3, t3, ys, ss, ts)
    else:
        r = x.reshape(M2, Cexp)
        out = pallas_merge_identity_relu(y3, s3, t3, r)

    out = out.reshape(N, Ho, Wo, Cexp)
    return jnp.transpose(out, (0, 3, 1, 2))                   # back to NCHW


# ---------------------------------------------------------------------------
# Pure-JAX reference (training-mode BN), for a correctness check in __main__.
# ---------------------------------------------------------------------------
def reference_forward(x_nchw, p, stride):
    hi = jax.lax.Precision.HIGHEST

    def conv1x1(x, w_io, s=1):
        return jnp.einsum("nihw,io->nohw", x[:, :, ::s, ::s], w_io, precision=hi)

    def bn(y, gamma, beta):
        mean = y.mean(axis=(0, 2, 3), keepdims=True)
        var = ((y - mean) ** 2).mean(axis=(0, 2, 3), keepdims=True)
        return (gamma.reshape(1, -1, 1, 1) * (y - mean)
                * jax.lax.rsqrt(var + EPS) + beta.reshape(1, -1, 1, 1))

    relu = lambda v: jnp.maximum(v, 0.0)
    h = relu(bn(conv1x1(x_nchw, p["w1"]), p["g1"], p["be1"]))
    cin2 = p["w2"].shape[0] // 9
    w2 = p["w2"].reshape(3, 3, cin2, p["w2"].shape[1])
    y2 = jax.lax.conv_general_dilated(
        h, w2, window_strides=(stride, stride), padding=((1, 1), (1, 1)),
        dimension_numbers=("NCHW", "HWIO", "NCHW"), precision=hi)
    h2 = relu(bn(y2, p["g2"], p["be2"]))
    y3 = bn(conv1x1(h2, p["w3"]), p["g3"], p["be3"])
    if p["has_skip"]:
        idn = bn(conv1x1(x_nchw, p["ws"], s=stride), p["gs"], p["bes"])
    else:
        idn = x_nchw
    return relu(y3 + idn)


if __name__ == "__main__":
    key = jax.random.PRNGKey(0)
    kx, kp = jax.random.split(key)

    N, Cin, H, W = 2, 16, 16, 16
    Cout, stride = 8, 2                     # expansion=4 -> 32 output channels

    x = jax.random.normal(kx, (N, Cin, H, W), jnp.float32)
    params = init_params(kp, Cin, Cout, stride)

    out = residual_block2_forward(x, params, stride)
    out = jax.block_until_ready(out)

    assert out.shape == (N, 4 * Cout, H // stride, W // stride), out.shape
    assert bool(jnp.all(jnp.isfinite(out)))
    assert bool(jnp.all(out >= 0.0))        # final ReLU

    ref = reference_forward(x, params, stride)
    assert bool(jnp.allclose(out, ref, rtol=2e-2, atol=2e-2)), float(
        jnp.max(jnp.abs(out - ref)))

    print("KERNEL_OK")
</pallas_src>

<mosaic_0001>
module attributes {stable_mosaic.version = 11 : i64} {
  func.func @kernel(%arg0: i32, %arg1: i32, %arg2: i32, %arg3: memref<256x16xf32, #tpu.memory_space<vmem>>, %arg4: memref<16x8xf32, #tpu.memory_space<vmem>>, %arg5: memref<256x8xf32, #tpu.memory_space<vmem>>, %arg6: memref<1x1x8xf32, #tpu.memory_space<vmem>>, %arg7: memref<1x1x8xf32, #tpu.memory_space<vmem>>) attributes {dimension_semantics = [#tpu.dimension_semantics<parallel>, #tpu.dimension_semantics<parallel>, #tpu.dimension_semantics<arbitrary>], iteration_bounds = array<i64: 2, 1, 1>, scalar_prefetch = 0 : i64, scratch_operands = 0 : i64, tpu.core_type = #tpu.core_type<tc>, window_params = [{transform_indices = @transform_0, window_bounds = array<i64: 256, 16>}, {transform_indices = @transform_1, window_bounds = array<i64: 16, 8>}, {transform_indices = @transform_2, window_bounds = array<i64: 256, 8>}, {transform_indices = @transform_3, window_bounds = array<i64: 1, 1, 8>}, {transform_indices = @transform_4, window_bounds = array<i64: 1, 1, 8>}]} {
    %c0 = arith.constant 0 : index
    %c0_0 = arith.constant 0 : index
    %0 = vector.load %arg3[%c0, %c0_0] : memref<256x16xf32, #tpu.memory_space<vmem>>, vector<256x16xf32>
    %c0_1 = arith.constant 0 : index
    %c0_2 = arith.constant 0 : index
    %1 = vector.load %arg4[%c0_1, %c0_2] : memref<16x8xf32, #tpu.memory_space<vmem>>, vector<16x8xf32>
    %cst = arith.constant dense<0.000000e+00> : vector<256x8xf32>
    %2 = tpu.matmul %0, %1, %cst {dimension_numbers = #tpu.dot_dimension_numbers<[1], [0], [0], [1], [0, 0, 1, 1], [], []>} : vector<256x16xf32>, vector<16x8xf32>, vector<256x8xf32> -> vector<256x8xf32>
    %c0_i32 = arith.constant 0 : i32
    %3 = arith.cmpi eq, %arg2, %c0_i32 : i32
    %4 = arith.extui %3 : i1 to i32
    %c0_i32_3 = arith.constant 0 : i32
    %5 = arith.cmpi ne, %4, %c0_i32_3 : i32
    scf.if %5 {
      %c0_8 = arith.constant 0 : index
      %c0_9 = arith.constant 0 : index
      %12 = vector.load %arg5[%c0_8, %c0_9] : memref<256x8xf32, #tpu.memory_space<vmem>>, vector<256x8xf32>
      tpu.vector_store %arg5[%c0_8, %c0_9], %2 {strides = array<i32>} : memref<256x8xf32, #tpu.memory_space<vmem>>, vector<256x8xf32>,
    } else {
    }
    %c0_i32_4 = arith.constant 0 : i32
    %6 = arith.cmpi ne, %arg2, %c0_i32_4 : i32
    %7 = arith.extui %6 : i1 to i32
    %c0_i32_5 = arith.constant 0 : i32
    %8 = arith.cmpi ne, %7, %c0_i32_5 : i32
    scf.if %8 {
      %c0_8 = arith.constant 0 : index
      %c0_9 = arith.constant 0 : index
      %12 = vector.load %arg5[%c0_8, %c0_9] : memref<256x8xf32, #tpu.memory_space<vmem>>, vector<256x8xf32>
      %13 = arith.addf %12, %2 : vector<256x8xf32>
      %c0_10 = arith.constant 0 : index
      %c0_11 = arith.constant 0 : index
      %14 = vector.load %arg5[%c0_10, %c0_11] : memref<256x8xf32, #tpu.memory_space<vmem>>, vector<256x8xf32>
      tpu.vector_store %arg5[%c0_10, %c0_11], %13 {strides = array<i32>} : memref<256x8xf32, #tpu.memory_space<vmem>>, vector<256x8xf32>,
    } else {
    }
    %c0_i32_6 = arith.constant 0 : i32
    %9 = arith.cmpi eq, %arg2, %c0_i32_6 : i32
    %10 = arith.extui %9 : i1 to i32
    %c0_i32_7 = arith.constant 0 : i32
    %11 = arith.cmpi ne, %10, %c0_i32_7 : i32
    scf.if %11 {
      %c0_8 = arith.constant 0 : index
      %c0_9 = arith.constant 0 : index
      %12 = vector.load %arg5[%c0_8, %c0_9] : memref<256x8xf32, #tpu.memory_space<vmem>>, vector<256x8xf32>
      %cst_10 = arith.constant dense<0.000000e+00> : vector<8xf32>
      %13 = vector.multi_reduction <add>, %12, %cst_10 [0] : vector<256x8xf32> to vector<8xf32>
      %14 = vector.shape_cast %13 : vector<8xf32> to vector<1x8xf32>
      %15 = vector.shape_cast %14 : vector<1x8xf32> to vector<1x1x8xf32>
      %c0_11 = arith.constant 0 : index
      %c0_12 = arith.constant 0 : index
      %c0_13 = arith.constant 0 : index
      %16 = vector.load %arg6[%c0_11, %c0_12, %c0_13] : memref<1x1x8xf32, #tpu.memory_space<vmem>>, vector<1x1x8xf32>
      tpu.vector_store %arg6[%c0_11, %c0_12, %c0_13], %15 {strides = array<i32>} : memref<1x1x8xf32, #tpu.memory_space<vmem>>, vector<1x1x8xf32>,
      %17 = arith.mulf %12, %12 : vector<256x8xf32>
      %cst_14 = arith.constant dense<0.000000e+00> : vector<8xf32>
      %18 = vector.multi_reduction <add>, %17, %cst_14 [0] : vector<256x8xf32> to vector<8xf32>
      %19 = vector.shape_cast %18 : vector<8xf32> to vector<1x8xf32>
      %20 = vector.shape_cast %19 : vector<1x8xf32> to vector<1x1x8xf32>
      %c0_15 = arith.constant 0 : index
      %c0_16 = arith.constant 0 : index
      %c0_17 = arith.constant 0 : index
      %21 = vector.load %arg7[%c0_15, %c0_16, %c0_17] : memref<1x1x8xf32, #tpu.memory_space<vmem>>, vector<1x1x8xf32>
      tpu.vector_store %arg7[%c0_15, %c0_16, %c0_17], %20 {strides = array<i32>} : memref<1x1x8xf32, #tpu.memory_space<vmem>>, vector<1x1x8xf32>,
    } else {
    }
    return
  }
  func.func @transform_0(%arg0: i32, %arg1: i32, %arg2: i32) -> (i32, i32) {
    %c0_i32 = arith.constant 0 : i32
    return %arg0, %arg2 : i32, i32
  }
  func.func @transform_1(%arg0: i32, %arg1: i32, %arg2: i32) -> (i32, i32) {
    %c0_i32 = arith.constant 0 : i32
    return %arg2, %arg1 : i32, i32
  }
  func.func @transform_2(%arg0: i32, %arg1: i32, %arg2: i32) -> (i32, i32) {
    %c0_i32 = arith.constant 0 : i32
    return %arg0, %arg1 : i32, i32
  }
  func.func @transform_3(%arg0: i32, %arg1: i32, %arg2: i32) -> (i32, i32, i32) {
    %c0_i32 = arith.constant 0 : i32
    %c0_i32_0 = arith.constant 0 : i32
    return %arg0, %c0_i32, %arg1 : i32, i32, i32
  }
  func.func @transform_4(%arg0: i32, %arg1: i32, %arg2: i32) -> (i32, i32, i32) {
    %c0_i32 = arith.constant 0 : i32
    %c0_i32_0 = arith.constant 0 : i32
    return %arg0, %c0_i32, %arg1 : i32, i32, i32
  }
}

</mosaic_0001>

<llo_original>
// kernel: tpu_custom_call.1
$region0: #{tpu_custom_call.1}
  #allocation0 [shape = 'u32[]', space=smem, size = 0x4, offset = 0x4, fixed_abs, tag = 'smem constant byte address 0x4 - core index']
  #allocation1 [shape = 'u32[72,128]{1,0:T(1,128)}', space=vmem, size = 0x9000, scoped, tag = 'internal scratch']
  %s0 = inlined_call_operand.vmem [shape: f32[512,16], index: 0, kind: input, shape index: {}]
  %s1 = inlined_call_operand.vmem [shape: f32[16,8], index: 1, kind: input, shape index: {}]
  %s2 = inlined_call_operand.vmem [shape: f32[512,8], index: 2, kind: output, shape index: {0}]
  %s3 = inlined_call_operand.hbm [shape: f32[2,1,8], index: 3, kind: output, shape index: {1}]
  %s4 = inlined_call_operand.hbm [shape: f32[2,1,8], index: 4, kind: output, shape index: {2}]
  %5 = xla_tuple %s2, %s3, %s4
  %s6 = sld [smem:[#allocation0]]
  $region69: #{tpu_custom_call.1} parent=0
    _
  %s8 = ssub.s32 1, %s6
  %s9 = scalar_select 0, %s8, %s6
  $region1: #{tpu_custom_call.1} parent=0
    #allocation2 [shape = 'u8[1024]{0}', space=vmem, size = 0x400, scoped, tag = 'output window, operand 1']
    #allocation3 [shape = 's32[2]{0}', space=sflag, size = 0x8, scoped, tag = 'scoped memory for tpu_custom_call.1']
    #allocation4 [shape = 'u8[1024]{0}', space=vmem, size = 0x400, scoped, tag = 'output window, operand 2']
    #allocation5 [shape = 's32[2]{0}', space=sflag, size = 0x8, scoped, tag = 'scoped memory for tpu_custom_call.1']
    %10 = vsyncpa [#allocation3], 0
    %s11 = scalar_lea.sflag [#allocation3], 1
    %12 = vsyncpa %s11, 0
    %13 = vsyncpa [#allocation5], 0
    %s14 = scalar_lea.sflag [#allocation5], 1
    %15 = vsyncpa %s14, 0
    loop: start=0, step=1, limit=4
    $region2: #{tpu_custom_call.1} parent=1 // loop_pre_header
      _
    $region3: #{tpu_custom_call.1} parent=1 // loop_header
      %s17 = sphi 0, %s21
      %p18 = scmp.ge.s32.totalorder %s17, 4
      %s24 = sphi 0, %s43
      %s25 = sphi 0, %s39
      %s26 = sphi 0, %s35
      %s27 = sphi 0, %s24
      %s28 = sphi 0, %s25
      %s29 = sphi 0, %s26
      %s30 = sphi 0, %s27
      %s31 = sphi 0, %s28
      %s32 = sphi 0, %s29
      %s48 = sphi 0, %s50
      %s51 = sphi 0, %s48
      %s52 = sphi 0, %s51
      %s68 = sphi 0, %s52
      %s76 = sphi 0, %s78
      %s79 = sphi 0, %s76
      %s80 = sphi 0, %s79
      %s96 = sphi 0, %s80
      %s104 = sphi 0, %s106
      %s107 = sphi 0, %s104
      %s108 = sphi 0, %s107
      %s124 = sphi 0, %s108
      %s132 = sphi 0, %s134
      %s135 = sphi 0, %s132
      %s136 = sphi 0, %s135
      %s152 = sphi 0, %s136
      %s160 = sphi 0, %s162
      %s163 = sphi 0, %s160
      %s164 = sphi 0, %s163
      %s180 = sphi 0, %s164
    $region4: #{tpu_custom_call.1} parent=1 // loop_header_branch
      %20 = sbr.rel (%p18) target = $region8
    $region5: #{tpu_custom_call.1} parent=1 // loop_body
      %s22 = ssub.s32 %s17, 1
      %s23 = ssub.s32 %s17, 2
      %s33 = sadd.s32 1, %s26
      %p34 = scmp.ge.s32.totalorder %s33, 1
      %s35 = scalar_select %p34, 0, %s33
      %s36 = sadd.s32 1, %s25
      %s37 = scalar_select %p34, %s36, %s25
      %p38 = scmp.ge.s32.totalorder %s37, 1
      %s39 = scalar_select %p38, 0, %s37
      %s40 = sadd.s32 1, %s24
      %s41 = scalar_select %p38, %s40, %s24
      %p42 = scmp.ge.s32.totalorder %s41, 2
      %s43 = scalar_select %p42, 0, %s41
      %s44 = ssub.s32 %s24, %s43
      %s45 = ssub.s32 %s26, %s35
      %s46 = sor.u32 %s44, %s45
      %p47 = scmp.eq.s32.totalorder %s46, 0
      %s49 = sadd.s32 %s48, 1
      %s50 = scalar_select %p47, %s48, %s49
      %p53 = pneg %p47
      %p54 = scmp.eq.s32.totalorder %s17, 1
      %p55 = por %p53, %p54
      %p56 = scmp.ne.s32.totalorder %s48, %s51
      %p57 = scmp.eq.s32.totalorder %s17, 0
      %p58 = por %p56, %p57
      %p59 = scmp.ne.s32.totalorder %s48, %s51
      %p60 = scmp.eq.s32.totalorder %s22, 1
      %p61 = por %p59, %p60
      %p62 = scmp.ne.s32.totalorder %s51, %s52
      %p63 = scmp.eq.s32.totalorder %s22, 0
      %p64 = por %p62, %p63
      %p65 = scmp.ne.s32.totalorder %s51, %s52
      %p66 = scmp.eq.s32.totalorder %s23, 1
      %p67 = por %p65, %p66
      %p69 = scmp.ne.s32.totalorder %s52, %s68
      %p70 = scmp.eq.s32.totalorder %s23, 0
      %p71 = por %p69, %p70
      %s72 = ssub.s32 %s26, %s35
      %s73 = ssub.s32 %s25, %s39
      %s74 = sor.u32 %s72, %s73
      %p75 = scmp.eq.s32.totalorder %s74, 0
      %s77 = sadd.s32 %s76, 1
      %s78 = scalar_select %p75, %s76, %s77
      %p81 = pneg %p75
      %p82 = scmp.eq.s32.totalorder %s17, 1
      %p83 = por %p81, %p82
      %p84 = scmp.ne.s32.totalorder %s76, %s79
      %p85 = scmp.eq.s32.totalorder %s17, 0
      %p86 = por %p84, %p85
      %p87 = scmp.ne.s32.totalorder %s76, %s79
      %p88 = scmp.eq.s32.totalorder %s22, 1
      %p89 = por %p87, %p88
      %p90 = scmp.ne.s32.totalorder %s79, %s80
      %p91 = scmp.eq.s32.totalorder %s22, 0
      %p92 = por %p90, %p91
      %p93 = scmp.ne.s32.totalorder %s79, %s80
      %p94 = scmp.eq.s32.totalorder %s23, 1
      %p95 = por %p93, %p94
      %p97 = scmp.ne.s32.totalorder %s80, %s96
      %p98 = scmp.eq.s32.totalorder %s23, 0
      %p99 = por %p97, %p98
      %s100 = ssub.s32 %s24, %s43
      %s101 = ssub.s32 %s25, %s39
      %s102 = sor.u32 %s100, %s101
      %p103 = scmp.eq.s32.totalorder %s102, 0
      %s105 = sadd.s32 %s104, 1
      %s106 = scalar_select %p103, %s104, %s105
      %p109 = pneg %p103
      %p110 = scmp.eq.s32.totalorder %s17, 1
      %p111 = por %p109, %p110
      %p112 = scmp.ne.s32.totalorder %s104, %s107
      %p113 = scmp.eq.s32.totalorder %s17, 0
      %p114 = por %p112, %p113
      %p115 = scmp.ne.s32.totalorder %s104, %s107
      %p116 = scmp.eq.s32.totalorder %s22, 1
      %p117 = por %p115, %p116
      %p118 = scmp.ne.s32.totalorder %s107, %s108
      %p119 = scmp.eq.s32.totalorder %s22, 0
      %p120 = por %p118, %p119
      %p121 = scmp.ne.s32.totalorder %s107, %s108
      %p122 = scmp.eq.s32.totalorder %s23, 1
      %p123 = por %p121, %p122
      %p125 = scmp.ne.s32.totalorder %s108, %s124
      %p126 = scmp.eq.s32.totalorder %s23, 0
      %p127 = por %p125, %p126
      %s128 = ssub.s32 %s24, %s43
      %s129 = ssub.s32 %s25, %s39
      %s130 = sor.u32 %s128, %s129
      %p131 = scmp.eq.s32.totalorder %s130, 0
      %s133 = sadd.s32 %s132, 1
      %s134 = scalar_select %p131, %s132, %s133
      %p137 = pneg %p131
      %p138 = scmp.eq.s32.totalorder %s17, 1
      %p139 = por %p137, %p138
      %p140 = scmp.ne.s32.totalorder %s132, %s135
      %p141 = scmp.eq.s32.totalorder %s17, 0
      %p142 = por %p140, %p141
      %p143 = scmp.ne.s32.totalorder %s132, %s135
      %p144 = scmp.eq.s32.totalorder %s22, 1
      %p145 = por %p143, %p144
      %p146 = scmp.ne.s32.totalorder %s135, %s136
      %p147 = scmp.eq.s32.totalorder %s22, 0
      %p148 = por %p146, %p147
      %p149 = scmp.ne.s32.totalorder %s135, %s136
      %p150 = scmp.eq.s32.totalorder %s23, 1
      %p151 = por %p149, %p150
      %p153 = scmp.ne.s32.totalorder %s136, %s152
      %p154 = scmp.eq.s32.totalorder %s23, 0
      %p155 = por %p153, %p154
      %s156 = ssub.s32 %s24, %s43
      %s157 = ssub.s32 %s25, %s39
      %s158 = sor.u32 %s156, %s157
      %p159 = scmp.eq.s32.totalorder %s158, 0
      %s161 = sadd.s32 %s160, 1
      %s162 = scalar_select %p159, %s160, %s161
      %p165 = pneg %p159
      %p166 = scmp.eq.s32.totalorder %s17, 1
      %p167 = por %p165, %p166
      %p168 = scmp.ne.s32.totalorder %s160, %s163
      %p169 = scmp.eq.s32.totalorder %s17, 0
      %p170 = por %p168, %p169
      %p171 = scmp.ne.s32.totalorder %s160, %s163
      %p172 = scmp.eq.s32.totalorder %s22, 1
      %p173 = por %p171, %p172
      %p174 = scmp.ne.s32.totalorder %s163, %s164
      %p175 = scmp.eq.s32.totalorder %s22, 0
      %p176 = por %p174, %p175
      %p177 = scmp.ne.s32.totalorder %s163, %s164
      %p178 = scmp.eq.s32.totalorder %s23, 1
      %p179 = por %p177, %p178
      %p181 = scmp.ne.s32.totalorder %s164, %s180
      %p182 = scmp.eq.s32.totalorder %s23, 0
      %p183 = por %p181, %p182
      %p184 = scmp.le.s32.totalorder 1, %s17
      %p185 = scmp.lt.s32.totalorder %s17, 3
      %p186 = pnand %p184, %p185
      %p187 = pneg %p186
      // Predicated region
      $region9: #{tpu_custom_call.1} parent=5 // pred_check
        _
      $region10: #{tpu_custom_call.1} parent=5 // pred_check_branch
        %189 = sbr.rel (%p186) target = $region12
      $region11: #{tpu_custom_call.1} parent=5 // pred_region
        %s190 = ssub.s32 %s17, 1
        // Predicated region
        $region13: #{tpu_custom_call.1} parent=11 // pred_check
          %p191 = pneg %p92
        $region14: #{tpu_custom_call.1} parent=11 // pred_check_branch
          %193 = sbr.rel (%p191) target = $region16
        $region15: #{tpu_custom_call.1} parent=11 // pred_region
          %s194 = smul.u32 2, %s29
          %p195 = scmp.lt.s32.totalorder %s194, 1
          %s196 = scalar_select %p195, %s194, 1
          %p197 = scmp.lt.s32.totalorder %s28, 0
          %s198 = scalar_select %p197, %s28, 0
          %s199 = sadd.s32 %s198, %s196
          %s200 = smul.addr %s199, 8
          %s201 = scalar_lea.vmem %s1, %s200
          %s202 = smul.u32 2, %s29
        $region16: #{tpu_custom_call.1} parent=11 // pred_fallthru
          _
      $region12: #{tpu_custom_call.1} parent=5 // pred_fallthru
        _
      %p203 = scmp.lt.s32.totalorder %s17, 2
      // Predicated region
      $region17: #{tpu_custom_call.1} parent=5 // pred_check
        %p204 = pneg %p203
      $region18: #{tpu_custom_call.1} parent=5 // pred_check_branch
        %206 = sbr.rel (%p204) target = $region20
      $region19: #{tpu_custom_call.1} parent=5 // pred_region
        // Predicated region
        $region21: #{tpu_custom_call.1} parent=19 // pred_check
          %p207 = pneg %p58
        $region22: #{tpu_custom_call.1} parent=19 // pred_check_branch
          %209 = sbr.rel (%p207) target = $region24
        $region23: #{tpu_custom_call.1} parent=19 // pred_region
          %s210 = smul.u32 32, %s24
          %p211 = scmp.lt.s32.totalorder %s210, 63
          %s212 = scalar_select %p211, %s210, 63
          %p213 = scmp.lt.s32.totalorder %s26, 0
          %s214 = scalar_select %p213, %s26, 0
          %s215 = sadd.s32 %s214, %s212
          %s216 = smul.addr %s215, 8
          %s217 = scalar_lea.vmem %s0, %s216
          %s218 = smul.u32 32, %s24
        $region24: #{tpu_custom_call.1} parent=19 // pred_fallthru
          _
      $region20: #{tpu_custom_call.1} parent=5 // pred_fallthru
        _
      %p219 = scmp.le.s32.totalorder 1, %s17
      %p220 = scmp.lt.s32.totalorder %s17, 3
      %p221 = pnand %p219, %p220
      %p222 = pneg %p221
      // Predicated region
      $region25: #{tpu_custom_call.1} parent=5 // pred_check
        _
      $region26: #{tpu_custom_call.1} parent=5 // pred_check_branch
        %224 = sbr.rel (%p221) target = $region28
      $region27: #{tpu_custom_call.1} parent=5 // pred_region
        %s225 = ssub.s32 %s17, 1
        %s226 = smul.u32 32, %s27
        %p227 = scmp.lt.s32.totalorder %s226, 63
        %s228 = scalar_select %p227, %s226, 63
        %p229 = scmp.lt.s32.totalorder %s29, 0
        %s230 = scalar_select %p229, %s29, 0
        %s231 = sadd.s32 %s230, %s228
        %s232 = smul.addr %s231, 8
        %s233 = scalar_lea.vmem %s0, %s232
        %p234 = pneg %p64
        %p235 = pneg %p61
        %s236 = smul.u32 2, %s29
        %p237 = scmp.lt.s32.totalorder %s236, 1
        %s238 = scalar_select %p237, %s236, 1
        %p239 = scmp.lt.s32.totalorder %s28, 0
        %s240 = scalar_select %p239, %s28, 0
        %s241 = sadd.s32 %s240, %s238
        %s242 = smul.addr %s241, 8
        %s243 = scalar_lea.vmem %s1, %s242
        %p244 = pneg %p92
        %p245 = pneg %p89
        %p246 = pneg %p120
        %p247 = pneg %p117
        %s248 = smul.u32 32, %s27
        %p249 = scmp.lt.s32.totalorder %s248, 63
        %s250 = scalar_select %p249, %s248, 63
        %p251 = scmp.lt.s32.totalorder %s28, 0
        %s252 = scalar_select %p251, %s28, 0
        %s253 = sadd.s32 %s252, %s250
        %s254 = smul.addr %s253, 8
        %s255 = scalar_lea.vmem %s2, %s254
        %p256 = pneg %p148
        %p257 = pneg %p145
        %s258 = sand.u32 %s135, 1
        %s259 = scalar_lea.sflag [#allocation3], %s258
        %s260 = sand.u32 %s135, 1
        %s261 = scalar_lea.vmem [#allocation2], %s260
        %p262 = pneg %p176
        %p263 = pneg %p173
        %s264 = sand.u32 %s163, 1
        %s265 = scalar_lea.sflag [#allocation5], %s264
        %s266 = sand.u32 %s163, 1
        %s267 = scalar_lea.vmem [#allocation4], %s266
        %s268 = smul.u32 32, %s27
        %p269 = scmp.lt.s32.totalorder %s268, 63
        %s270 = scalar_select %p269, %s268, 63
        %p271 = scmp.lt.s32.totalorder %s29, 0
        %s272 = scalar_select %p271, %s29, 0
        %s273 = sadd.s32 %s272, %s270
        %s274 = smul.addr %s273, 8
        %s275 = scalar_lea.vmem %s0, %s274
        %s276 = smul.u32 32, %s27
        %s277 = smul.u32 2, %s29
        %p278 = scmp.lt.s32.totalorder %s277, 1
        %s279 = scalar_select %p278, %s277, 1
        %p280 = scmp.lt.s32.totalorder %s28, 0
        %s281 = scalar_select %p280, %s28, 0
        %s282 = sadd.s32 %s281, %s279
        %s283 = smul.addr %s282, 8
        %s284 = scalar_lea.vmem %s1, %s283
        %s285 = smul.u32 2, %s29
        %s286 = smul.u32 32, %s27
        %p287 = scmp.lt.s32.totalorder %s286, 63
        %s288 = scalar_select %p287, %s286, 63
        %p289 = scmp.lt.s32.totalorder %s28, 0
        %s290 = scalar_select %p289, %s28, 0
        %s291 = sadd.s32 %s290, %s288
        %s292 = smul.addr %s291, 8
        %s293 = scalar_lea.vmem %s2, %s292
        %s294 = smul.u32 32, %s27
        %v295 = vld [vmem:[%s275] sm:$0xff]
        %v296 = vld [vmem:[%s275 + $0x8] sm:$0xff]
        %v297 = vld [vmem:[%s275 + $0x10] sm:$0xff]
        %v298 = vld [vmem:[%s275 + $0x18] sm:$0xff]
        %v299 = vld [vmem:[%s275 + $0x20] sm:$0xff]
        %v300 = vld [vmem:[%s275 + $0x28] sm:$0xff]
        %v301 = vld [vmem:[%s275 + $0x30] sm:$0xff]
        %v302 = vld [vmem:[%s275 + $0x38] sm:$0xff]
        %v303 = vld [vmem:[%s275 + $0x40] sm:$0xff]
        %v304 = vld [vmem:[%s275 + $0x48] sm:$0xff]
        %v305 = vld [vmem:[%s275 + $0x50] sm:$0xff]
        %v306 = vld [vmem:[%s275 + $0x58] sm:$0xff]
        %v307 = vld [vmem:[%s275 + $0x60] sm:$0xff]
        %v308 = vld [vmem:[%s275 + $0x68] sm:$0xff]
        %v309 = vld [vmem:[%s275 + $0x70] sm:$0xff]
        %v310 = vld [vmem:[%s275 + $0x78] sm:$0xff]
        %v311 = vld [vmem:[%s275 + $0x80] sm:$0xff]
        %v312 = vld [vmem:[%s275 + $0x88] sm:$0xff]
        %v313 = vld [vmem:[%s275 + $0x90] sm:$0xff]
        %v314 = vld [vmem:[%s275 + $0x98] sm:$0xff]
        %v315 = vld [vmem:[%s275 + $0xa0] sm:$0xff]
        %v316 = vld [vmem:[%s275 + $0xa8] sm:$0xff]
        %v317 = vld [vmem:[%s275 + $0xb0] sm:$0xff]
        %v318 = vld [vmem:[%s275 + $0xb8] sm:$0xff]
        %v319 = vld [vmem:[%s275 + $0xc0] sm:$0xff]
        %v320 = vld [vmem:[%s275 + $0xc8] sm:$0xff]
        %v321 = vld [vmem:[%s275 + $0xd0] sm:$0xff]
        %v322 = vld [vmem:[%s275 + $0xd8] sm:$0xff]
        %v323 = vld [vmem:[%s275 + $0xe0] sm:$0xff]
        %v324 = vld [vmem:[%s275 + $0xe8] sm:$0xff]
        %v325 = vld [vmem:[%s275 + $0xf0] sm:$0xff]
        %v326 = vld [vmem:[%s275 + $0xf8] sm:$0xff]
        %v327 = vld [vmem:[%s284] sm:$0xff]
        %v328 = vld [vmem:[%s284 + $0x8] sm:$0xff]
        %vm329 = vcmask 130048
        %v331 = vsel %vm329, %v295, 0
        %v334 = vsel %vm329, %v296, 0
        %v337 = vsel %vm329, %v297, 0
        %v340 = vsel %vm329, %v298, 0
        %v343 = vsel %vm329, %v299, 0
        %v346 = vsel %vm329, %v300, 0
        %v349 = vsel %vm329, %v301, 0
        %v352 = vsel %vm329, %v302, 0
        %v355 = vsel %vm329, %v303, 0
        %v358 = vsel %vm329, %v304, 0
        %v361 = vsel %vm329, %v305, 0
        %v364 = vsel %vm329, %v306, 0
        %v367 = vsel %vm329, %v307, 0
        %v370 = vsel %vm329, %v308, 0
        %v373 = vsel %vm329, %v309, 0
        %v376 = vsel %vm329, %v310, 0
        %v379 = vsel %vm329, %v311, 0
        %v382 = vsel %vm329, %v312, 0
        %v385 = vsel %vm329, %v313, 0
        %v388 = vsel %vm329, %v314, 0
        %v391 = vsel %vm329, %v315, 0
        %v394 = vsel %vm329, %v316, 0
        %v397 = vsel %vm329, %v317, 0
        %v400 = vsel %vm329, %v318, 0
        %v403 = vsel %vm329, %v319, 0
        %v406 = vsel %vm329, %v320, 0
        %v409 = vsel %vm329, %v321, 0
        %v412 = vsel %vm329, %v322, 0
        %v415 = vsel %vm329, %v323, 0
        %v418 = vsel %vm329, %v324, 0
        %v421 = vsel %vm329, %v325, 0
        %v424 = vsel %vm329, %v326, 0
        %426 = vmatpush.msra.mxu0 0.0
        %427 = vmatpush.msra.mxu0 0.0
        %428 = vmatpush.msra.mxu0 0.0
        %429 = vmatpush.msra.mxu0 0.0
        %430 = vmatpush.msra.mxu0 0.0
        %431 = vmatpush.msra.mxu0 0.0
        %432 = vmatpush.msra.mxu0 0.0
        %433 = vmatpush.msra.mxu0 0.0
        %434 = vmatpush.msra.mxu0 0.0
        %435 = vmatpush.msra.mxu0 0.0
        %436 = vmatpush.msra.mxu0 0.0
        %437 = vmatpush.msra.mxu0 0.0
        %438 = vmatpush.msra.mxu0 0.0
        %439 = vmatpush.msra.mxu0 0.0
        %440 = vmatpush.msra.mxu0 %v328
        %441 = vmatpush.msra.mxu0 %v327
        %442 = vmatmul.f32.gmra.mxu0 %v331
        %v443 = vpop.f32.mrf.mxu0
        %v444 = vadd.f32 0.0, %v443
        %445 = vmatmul.f32.gmra.mxu0 %v334
        %v446 = vpop.f32.mrf.mxu0
        %v447 = vadd.f32 0.0, %v446
        %448 = vmatmul.f32.gmra.mxu0 %v337
        %v449 = vpop.f32.mrf.mxu0
        %v450 = vadd.f32 0.0, %v449
        %451 = vmatmul.f32.gmra.mxu0 %v340
        %v452 = vpop.f32.mrf.mxu0
        %v453 = vadd.f32 0.0, %v452
        %454 = vmatmul.f32.gmra.mxu0 %v343
        %v455 = vpop.f32.mrf.mxu0
        %v456 = vadd.f32 0.0, %v455
        %457 = vmatmul.f32.gmra.mxu0 %v346
        %v458 = vpop.f32.mrf.mxu0
        %v459 = vadd.f32 0.0, %v458
        %460 = vmatmul.f32.gmra.mxu0 %v349
        %v461 = vpop.f32.mrf.mxu0
        %v462 = vadd.f32 0.0, %v461
        %463 = vmatmul.f32.gmra.mxu0 %v352
        %v464 = vpop.f32.mrf.mxu0
        %v465 = vadd.f32 0.0, %v464
        %466 = vmatmul.f32.gmra.mxu0 %v355
        %v467 = vpop.f32.mrf.mxu0
        %v468 = vadd.f32 0.0, %v467
        %469 = vmatmul.f32.gmra.mxu0 %v358
        %v470 = vpop.f32.mrf.mxu0
        %v471 = vadd.f32 0.0, %v470
        %472 = vmatmul.f32.gmra.mxu0 %v361
        %v473 = vpop.f32.mrf.mxu0
        %v474 = vadd.f32 0.0, %v473
        %475 = vmatmul.f32.gmra.mxu0 %v364
        %v476 = vpop.f32.mrf.mxu0
        %v477 = vadd.f32 0.0, %v476
        %478 = vmatmul.f32.gmra.mxu0 %v367
        %v479 = vpop.f32.mrf.mxu0
        %v480 = vadd.f32 0.0, %v479
        %481 = vmatmul.f32.gmra.mxu0 %v370
        %v482 = vpop.f32.mrf.mxu0
        %v483 = vadd.f32 0.0, %v482
        %484 = vmatmul.f32.gmra.mxu0 %v373
        %v485 = vpop.f32.mrf.mxu0
        %v486 = vadd.f32 0.0, %v485
        %487 = vmatmul.f32.gmra.mxu0 %v376
        %v488 = vpop.f32.mrf.mxu0
        %v489 = vadd.f32 0.0, %v488
        %490 = vmatmul.f32.gmra.mxu0 %v379
        %v491 = vpop.f32.mrf.mxu0
        %v492 = vadd.f32 0.0, %v491
        %493 = vmatmul.f32.gmra.mxu0 %v382
        %v494 = vpop.f32.mrf.mxu0
        %v495 = vadd.f32 0.0, %v494
        %496 = vmatmul.f32.gmra.mxu0 %v385
        %v497 = vpop.f32.mrf.mxu0
        %v498 = vadd.f32 0.0, %v497
        %499 = vmatmul.f32.gmra.mxu0 %v388
        %v500 = vpop.f32.mrf.mxu0
        %v501 = vadd.f32 0.0, %v500
        %502 = vmatmul.f32.gmra.mxu0 %v391
        %v503 = vpop.f32.mrf.mxu0
        %v504 = vadd.f32 0.0, %v503
        %505 = vmatmul.f32.gmra.mxu0 %v394
        %v506 = vpop.f32.mrf.mxu0
        %v507 = vadd.f32 0.0, %v506
        %508 = vmatmul.f32.gmra.mxu0 %v397
        %v509 = vpop.f32.mrf.mxu0
        %v510 = vadd.f32 0.0, %v509
        %511 = vmatmul.f32.gmra.mxu0 %v400
        %v512 = vpop.f32.mrf.mxu0
        %v513 = vadd.f32 0.0, %v512
        %514 = vmatmul.f32.gmra.mxu0 %v403
        %v515 = vpop.f32.mrf.mxu0
        %v516 = vadd.f32 0.0, %v515
        %517 = vmatmul.f32.gmra.mxu0 %v406
        %v518 = vpop.f32.mrf.mxu0
        %v519 = vadd.f32 0.0, %v518
        %520 = vmatmul.f32.gmra.mxu0 %v409
        %v521 = vpop.f32.mrf.mxu0
        %v522 = vadd.f32 0.0, %v521
        %523 = vmatmul.f32.gmra.mxu0 %v412
        %v524 = vpop.f32.mrf.mxu0
        %v525 = vadd.f32 0.0, %v524
        %526 = vmatmul.f32.gmra.mxu0 %v415
        %v527 = vpop.f32.mrf.mxu0
        %v528 = vadd.f32 0.0, %v527
        %529 = vmatmul.f32.gmra.mxu0 %v418
        %v530 = vpop.f32.mrf.mxu0
        %v531 = vadd.f32 0.0, %v530
        %532 = vmatmul.f32.gmra.mxu0 %v421
        %v533 = vpop.f32.mrf.mxu0
        %v534 = vadd.f32 0.0, %v533
        %535 = vmatmul.f32.gmra.mxu0 %v424
        %v536 = vpop.f32.mrf.mxu0
        %v537 = vadd.f32 0.0, %v536
        %538 = vdwg.mxu0
        %p539 = scmp.eq.s32.totalorder %s29, 0
        // Predicated region
        $region29: #{tpu_custom_call.1} parent=27 // pred_check
          %p540 = pneg %p539
        $region30: #{tpu_custom_call.1} parent=27 // pred_check_branch
          %542 = sbr.rel (%p540) target = $region32
        $region31: #{tpu_custom_call.1} parent=27 // pred_region
          %vm543 = vcmask 64512
          %544 = vst.msk [vmem:[%s293] sm:$0xff] %vm543, %v444
          %545 = vst.msk [vmem:[%s293 + $0x8] sm:$0xff] %vm543, %v447
          %546 = vst.msk [vmem:[%s293 + $0x10] sm:$0xff] %vm543, %v450
          %547 = vst.msk [vmem:[%s293 + $0x18] sm:$0xff] %vm543, %v453
          %548 = vst.msk [vmem:[%s293 + $0x20] sm:$0xff] %vm543, %v456
          %549 = vst.msk [vmem:[%s293 + $0x28] sm:$0xff] %vm543, %v459
          %550 = vst.msk [vmem:[%s293 + $0x30] sm:$0xff] %vm543, %v462
          %551 = vst.msk [vmem:[%s293 + $0x38] sm:$0xff] %vm543, %v465
          %552 = vst.msk [vmem:[%s293 + $0x40] sm:$0xff] %vm543, %v468
          %553 = vst.msk [vmem:[%s293 + $0x48] sm:$0xff] %vm543, %v471
          %554 = vst.msk [vmem:[%s293 + $0x50] sm:$0xff] %vm543, %v474
          %555 = vst.msk [vmem:[%s293 + $0x58] sm:$0xff] %vm543, %v477
          %556 = vst.msk [vmem:[%s293 + $0x60] sm:$0xff] %vm543, %v480
          %557 = vst.msk [vmem:[%s293 + $0x68] sm:$0xff] %vm543, %v483
          %558 = vst.msk [vmem:[%s293 + $0x70] sm:$0xff] %vm543, %v486
          %559 = vst.msk [vmem:[%s293 + $0x78] sm:$0xff] %vm543, %v489
          %560 = vst.msk [vmem:[%s293 + $0x80] sm:$0xff] %vm543, %v492
          %561 = vst.msk [vmem:[%s293 + $0x88] sm:$0xff] %vm543, %v495
          %562 = vst.msk [vmem:[%s293 + $0x90] sm:$0xff] %vm543, %v498
          %563 = vst.msk [vmem:[%s293 + $0x98] sm:$0xff] %vm543, %v501
          %564 = vst.msk [vmem:[%s293 + $0xa0] sm:$0xff] %vm543, %v504
          %565 = vst.msk [vmem:[%s293 + $0xa8] sm:$0xff] %vm543, %v507
          %566 = vst.msk [vmem:[%s293 + $0xb0] sm:$0xff] %vm543, %v510
          %567 = vst.msk [vmem:[%s293 + $0xb8] sm:$0xff] %vm543, %v513
          %568 = vst.msk [vmem:[%s293 + $0xc0] sm:$0xff] %vm543, %v516
          %569 = vst.msk [vmem:[%s293 + $0xc8] sm:$0xff] %vm543, %v519
          %570 = vst.msk [vmem:[%s293 + $0xd0] sm:$0xff] %vm543, %v522
          %571 = vst.msk [vmem:[%s293 + $0xd8] sm:$0xff] %vm543, %v525
          %572 = vst.msk [vmem:[%s293 + $0xe0] sm:$0xff] %vm543, %v528
          %573 = vst.msk [vmem:[%s293 + $0xe8] sm:$0xff] %vm543, %v531
          %574 = vst.msk [vmem:[%s293 + $0xf0] sm:$0xff] %vm543, %v534
          %575 = vst.msk [vmem:[%s293 + $0xf8] sm:$0xff] %vm543, %v537
        $region32: #{tpu_custom_call.1} parent=27 // pred_fallthru
          _
        %p576 = scmp.ne.s32.totalorder %s29, 0
        // Predicated region
        $region33: #{tpu_custom_call.1} parent=27 // pred_check
          %p577 = pneg %p576
        $region34: #{tpu_custom_call.1} parent=27 // pred_check_branch
          %579 = sbr.rel (%p577) target = $region36
        $region35: #{tpu_custom_call.1} parent=27 // pred_region
          %v580 = vld [vmem:[%s293] sm:$0xff]
          %v581 = vld [vmem:[%s293 + $0x8] sm:$0xff]
          %v582 = vld [vmem:[%s293 + $0x10] sm:$0xff]
          %v583 = vld [vmem:[%s293 + $0x18] sm:$0xff]
          %v584 = vld [vmem:[%s293 + $0x20] sm:$0xff]
          %v585 = vld [vmem:[%s293 + $0x28] sm:$0xff]
          %v586 = vld [vmem:[%s293 + $0x30] sm:$0xff]
          %v587 = vld [vmem:[%s293 + $0x38] sm:$0xff]
          %v588 = vld [vmem:[%s293 + $0x40] sm:$0xff]
          %v589 = vld [vmem:[%s293 + $0x48] sm:$0xff]
          %v590 = vld [vmem:[%s293 + $0x50] sm:$0xff]
          %v591 = vld [vmem:[%s293 + $0x58] sm:$0xff]
          %v592 = vld [vmem:[%s293 + $0x60] sm:$0xff]
          %v593 = vld [vmem:[%s293 + $0x68] sm:$0xff]
          %v594 = vld [vmem:[%s293 + $0x70] sm:$0xff]
          %v595 = vld [vmem:[%s293 + $0x78] sm:$0xff]
          %v596 = vld [vmem:[%s293 + $0x80] sm:$0xff]
          %v597 = vld [vmem:[%s293 + $0x88] sm:$0xff]
          %v598 = vld [vmem:[%s293 + $0x90] sm:$0xff]
          %v599 = vld [vmem:[%s293 + $0x98] sm:$0xff]
          %v600 = vld [vmem:[%s293 + $0xa0] sm:$0xff]
          %v601 = vld [vmem:[%s293 + $0xa8] sm:$0xff]
          %v602 = vld [vmem:[%s293 + $0xb0] sm:$0xff]
          %v603 = vld [vmem:[%s293 + $0xb8] sm:$0xff]
          %v604 = vld [vmem:[%s293 + $0xc0] sm:$0xff]
          %v605 = vld [vmem:[%s293 + $0xc8] sm:$0xff]
          %v606 = vld [vmem:[%s293 + $0xd0] sm:$0xff]
          %v607 = vld [vmem:[%s293 + $0xd8] sm:$0xff]
          %v608 = vld [vmem:[%s293 + $0xe0] sm:$0xff]
          %v609 = vld [vmem:[%s293 + $0xe8] sm:$0xff]
          %v610 = vld [vmem:[%s293 + $0xf0] sm:$0xff]
          %v611 = vld [vmem:[%s293 + $0xf8] sm:$0xff]
          %v612 = vadd.f32 %v580, %v444
          %v613 = vadd.f32 %v581, %v447
          %v614 = vadd.f32 %v582, %v450
          %v615 = vadd.f32 %v583, %v453
          %v616 = vadd.f32 %v584, %v456
          %v617 = vadd.f32 %v585, %v459
          %v618 = vadd.f32 %v586, %v462
          %v619 = vadd.f32 %v587, %v465
          %v620 = vadd.f32 %v588, %v468
          %v621 = vadd.f32 %v589, %v471
          %v622 = vadd.f32 %v590, %v474
          %v623 = vadd.f32 %v591, %v477
          %v624 = vadd.f32 %v592, %v480
          %v625 = vadd.f32 %v593, %v483
          %v626 = vadd.f32 %v594, %v486
          %v627 = vadd.f32 %v595, %v489
          %v628 = vadd.f32 %v596, %v492
          %v629 = vadd.f32 %v597, %v495
          %v630 = vadd.f32 %v598, %v498
          %v631 = vadd.f32 %v599, %v501
          %v632 = vadd.f32 %v600, %v504
          %v633 = vadd.f32 %v601, %v507
          %v634 = vadd.f32 %v602, %v510
          %v635 = vadd.f32 %v603, %v513
          %v636 = vadd.f32 %v604, %v516
          %v637 = vadd.f32 %v605, %v519
          %v638 = vadd.f32 %v606, %v522
          %v639 = vadd.f32 %v607, %v525
          %v640 = vadd.f32 %v608, %v528
          %v641 = vadd.f32 %v609, %v531
          %v642 = vadd.f32 %v610, %v534
          %v643 = vadd.f32 %v611, %v537
          %vm644 = vcmask 64512
          %645 = vst.msk [vmem:[%s293] sm:$0xff] %vm644, %v612
          %646 = vst.msk [vmem:[%s293 + $0x8] sm:$0xff] %vm644, %v613
          %647 = vst.msk [vmem:[%s293 + $0x10] sm:$0xff] %vm644, %v614
          %648 = vst.msk [vmem:[%s293 + $0x18] sm:$0xff] %vm644, %v615
          %649 = vst.msk [vmem:[%s293 + $0x20] sm:$0xff] %vm644, %v616
          %650 = vst.msk [vmem:[%s293 + $0x28] sm:$0xff] %vm644, %v617
          %651 = vst.msk [vmem:[%s293 + $0x30] sm:$0xff] %vm644, %v618
          %652 = vst.msk [vmem:[%s293 + $0x38] sm:$0xff] %vm644, %v619
          %653 = vst.msk [vmem:[%s293 + $0x40] sm:$0xff] %vm644, %v620
          %654 = vst.msk [vmem:[%s293 + $0x48] sm:$0xff] %vm644, %v621
          %655 = vst.msk [vmem:[%s293 + $0x50] sm:$0xff] %vm644, %v622
          %656 = vst.msk [vmem:[%s293 + $0x58] sm:$0xff] %vm644, %v623
          %657 = vst.msk [vmem:[%s293 + $0x60] sm:$0xff] %vm644, %v624
          %658 = vst.msk [vmem:[%s293 + $0x68] sm:$0xff] %vm644, %v625
          %659 = vst.msk [vmem:[%s293 + $0x70] sm:$0xff] %vm644, %v626
          %660 = vst.msk [vmem:[%s293 + $0x78] sm:$0xff] %vm644, %v627
          %661 = vst.msk [vmem:[%s293 + $0x80] sm:$0xff] %vm644, %v628
          %662 = vst.msk [vmem:[%s293 + $0x88] sm:$0xff] %vm644, %v629
          %663 = vst.msk [vmem:[%s293 + $0x90] sm:$0xff] %vm644, %v630
          %664 = vst.msk [vmem:[%s293 + $0x98] sm:$0xff] %vm644, %v631
          %665 = vst.msk [vmem:[%s293 + $0xa0] sm:$0xff] %vm644, %v632
          %666 = vst.msk [vmem:[%s293 + $0xa8] sm:$0xff] %vm644, %v633
          %667 = vst.msk [vmem:[%s293 + $0xb0] sm:$0xff] %vm644, %v634
          %668 = vst.msk [vmem:[%s293 + $0xb8] sm:$0xff] %vm644, %v635
          %669 = vst.msk [vmem:[%s293 + $0xc0] sm:$0xff] %vm644, %v636
          %670 = vst.msk [vmem:[%s293 + $0xc8] sm:$0xff] %vm644, %v637
          %671 = vst.msk [vmem:[%s293 + $0xd0] sm:$0xff] %vm644, %v638
          %672 = vst.msk [vmem:[%s293 + $0xd8] sm:$0xff] %vm644, %v639
          %673 = vst.msk [vmem:[%s293 + $0xe0] sm:$0xff] %vm644, %v640
          %674 = vst.msk [vmem:[%s293 + $0xe8] sm:$0xff] %vm644, %v641
          %675 = vst.msk [vmem:[%s293 + $0xf0] sm:$0xff] %vm644, %v642
          %676 = vst.msk [vmem:[%s293 + $0xf8] sm:$0xff] %vm644, %v643
        $region36: #{tpu_custom_call.1} parent=27 // pred_fallthru
          _
        // Predicated region
        $region37: #{tpu_custom_call.1} parent=27 // pred_check
          %p677 = pneg %p539
        $region38: #{tpu_custom_call.1} parent=27 // pred_check_branch
          %679 = sbr.rel (%p677) target = $region40
        $region39: #{tpu_custom_call.1} parent=27 // pred_region
          %v680 = vld [vmem:[%s293] sm:$0xff]
          %v681 = vld [vmem:[%s293 + $0x8] sm:$0xff]
          %v682 = vld [vmem:[%s293 + $0x10] sm:$0xff]
          %v683 = vld [vmem:[%s293 + $0x18] sm:$0xff]
          %v684 = vld [vmem:[%s293 + $0x20] sm:$0xff]
          %v685 = vld [vmem:[%s293 + $0x28] sm:$0xff]
          %v686 = vld [vmem:[%s293 + $0x30] sm:$0xff]
          %v687 = vld [vmem:[%s293 + $0x38] sm:$0xff]
          %v688 = vld [vmem:[%s293 + $0x40] sm:$0xff]
          %v689 = vld [vmem:[%s293 + $0x48] sm:$0xff]
          %v690 = vld [vmem:[%s293 + $0x50] sm:$0xff]
          %v691 = vld [vmem:[%s293 + $0x58] sm:$0xff]
          %v692 = vld [vmem:[%s293 + $0x60] sm:$0xff]
          %v693 = vld [vmem:[%s293 + $0x68] sm:$0xff]
          %v694 = vld [vmem:[%s293 + $0x70] sm:$0xff]
          %v695 = vld [vmem:[%s293 + $0x78] sm:$0xff]
          %v696 = vld [vmem:[%s293 + $0x80] sm:$0xff]
          %v697 = vld [vmem:[%s293 + $0x88] sm:$0xff]
          %v698 = vld [vmem:[%s293 + $0x90] sm:$0xff]
          %v699 = vld [vmem:[%s293 + $0x98] sm:$0xff]
          %v700 = vld [vmem:[%s293 + $0xa0] sm:$0xff]
          %v701 = vld [vmem:[%s293 + $0xa8] sm:$0xff]
          %v702 = vld [vmem:[%s293 + $0xb0] sm:$0xff]
          %v703 = vld [vmem:[%s293 + $0xb8] sm:$0xff]
          %v704 = vld [vmem:[%s293 + $0xc0] sm:$0xff]
          %v705 = vld [vmem:[%s293 + $0xc8] sm:$0xff]
          %v706 = vld [vmem:[%s293 + $0xd0] sm:$0xff]
          %v707 = vld [vmem:[%s293 + $0xd8] sm:$0xff]
          %v708 = vld [vmem:[%s293 + $0xe0] sm:$0xff]
          %v709 = vld [vmem:[%s293 + $0xe8] sm:$0xff]
          %v710 = vld [vmem:[%s293 + $0xf0] sm:$0xff]
          %v711 = vld [vmem:[%s293 + $0xf8] sm:$0xff]
          %vm712 = vcmask 64512
          %v713 = vsel %vm712, %v680, 0.0
          %v714 = vsel %vm712, %v681, 0.0
          %v715 = vadd.f32 %v713, %v714
          %v716 = vsel %vm712, %v682, 0.0
          %v717 = vadd.f32 %v715, %v716
          %v718 = vsel %vm712, %v683, 0.0
          %v719 = vadd.f32 %v717, %v718
          %v720 = vsel %vm712, %v684, 0.0
          %v721 = vadd.f32 %v719, %v720
          %v722 = vsel %vm712, %v685, 0.0
          %v723 = vadd.f32 %v721, %v722
          %v724 = vsel %vm712, %v686, 0.0
          %v725 = vadd.f32 %v723, %v724
          %v726 = vsel %vm712, %v687, 0.0
          %v727 = vadd.f32 %v725, %v726
          %v728 = vsel %vm712, %v688, 0.0
          %v729 = vadd.f32 %v727, %v728
          %v730 = vsel %vm712, %v689, 0.0
          %v731 = vadd.f32 %v729, %v730
          %v732 = vsel %vm712, %v690, 0.0
          %v733 = vadd.f32 %v731, %v732
          %v734 = vsel %vm712, %v691, 0.0
          %v735 = vadd.f32 %v733, %v734
          %v736 = vsel %vm712, %v692, 0.0
          %v737 = vadd.f32 %v735, %v736
          %v738 = vsel %vm712, %v693, 0.0
          %v739 = vadd.f32 %v737, %v738
          %v740 = vsel %vm712, %v694, 0.0
          %v741 = vadd.f32 %v739, %v740
          %v742 = vsel %vm712, %v695, 0.0
          %v743 = vadd.f32 %v741, %v742
          %v744 = vsel %vm712, %v696, 0.0
          %v745 = vadd.f32 %v743, %v744
          %v746 = vsel %vm712, %v697, 0.0
          %v747 = vadd.f32 %v745, %v746
          %v748 = vsel %vm712, %v698, 0.0
          %v749 = vadd.f32 %v747, %v748
          %v750 = vsel %vm712, %v699, 0.0
          %v751 = vadd.f32 %v749, %v750
          %v752 = vsel %vm712, %v700, 0.0
          %v753 = vadd.f32 %v751, %v752
          %v754 = vsel %vm712, %v701, 0.0
          %v755 = vadd.f32 %v753, %v754
          %v756 = vsel %vm712, %v702, 0.0
          %v757 = vadd.f32 %v755, %v756
          %v758 = vsel %vm712, %v703, 0.0
          %v759 = vadd.f32 %v757, %v758
          %v760 = vsel %vm712, %v704, 0.0
          %v761 = vadd.f32 %v759, %v760
          %v762 = vsel %vm712, %v705, 0.0
          %v763 = vadd.f32 %v761, %v762
          %v764 = vsel %vm712, %v706, 0.0
          %v765 = vadd.f32 %v763, %v764
          %v766 = vsel %vm712, %v707, 0.0
          %v767 = vadd.f32 %v765, %v766
          %v768 = vsel %vm712, %v708, 0.0
          %v769 = vadd.f32 %v767, %v768
          %v770 = vsel %vm712, %v709, 0.0
          %v771 = vadd.f32 %v769, %v770
          %v772 = vsel %vm712, %v710, 0.0
          %v773 = vadd.f32 %v771, %v772
          %v774 = vsel %vm712, %v711, 0.0
          %v775 = vadd.f32 %v773, %v774
          %v776 = vrot.slane %v775, 4
          %v777 = vadd.f32 %v775, %v776
          %v778 = vrot.slane %v777, 2
          %v779 = vadd.f32 %v777, %v778
          %v780 = vrot.slane %v779, 1
          %v781 = vadd.f32 %v779, %v780
          %vm782 = vcmask 57344
          %783 = vst.msk [vmem:[%s261] sm:$0x1] %vm782, %v781
          %v784 = vmul.f32 %v680, %v680
          %v785 = vmul.f32 %v681, %v681
          %v786 = vmul.f32 %v682, %v682
          %v787 = vmul.f32 %v683, %v683
          %v788 = vmul.f32 %v684, %v684
          %v789 = vmul.f32 %v685, %v685
          %v790 = vmul.f32 %v686, %v686
          %v791 = vmul.f32 %v687, %v687
          %v792 = vmul.f32 %v688, %v688
          %v793 = vmul.f32 %v689, %v689
          %v794 = vmul.f32 %v690, %v690
          %v795 = vmul.f32 %v691, %v691
          %v796 = vmul.f32 %v692, %v692
          %v797 = vmul.f32 %v693, %v693
          %v798 = vmul.f32 %v694, %v694
          %v799 = vmul.f32 %v695, %v695
          %v800 = vmul.f32 %v696, %v696
          %v801 = vmul.f32 %v697, %v697
          %v802 = vmul.f32 %v698, %v698
          %v803 = vmul.f32 %v699, %v699
          %v804 = vmul.f32 %v700, %v700
          %v805 = vmul.f32 %v701, %v701
          %v806 = vmul.f32 %v702, %v702
          %v807 = vmul.f32 %v703, %v703
          %v808 = vmul.f32 %v704, %v704
          %v809 = vmul.f32 %v705, %v705
          %v810 = vmul.f32 %v706, %v706
          %v811 = vmul.f32 %v707, %v707
          %v812 = vmul.f32 %v708, %v708
          %v813 = vmul.f32 %v709, %v709
          %v814 = vmul.f32 %v710, %v710
          %v815 = vmul.f32 %v711, %v711
          %v816 = vsel %vm712, %v784, 0.0
          %v817 = vsel %vm712, %v785, 0.0
          %v818 = vadd.f32 %v816, %v817
          %v819 = vsel %vm712, %v786, 0.0
          %v820 = vadd.f32 %v818, %v819
          %v821 = vsel %vm712, %v787, 0.0
          %v822 = vadd.f32 %v820, %v821
          %v823 = vsel %vm712, %v788, 0.0
          %v824 = vadd.f32 %v822, %v823
          %v825 = vsel %vm712, %v789, 0.0
          %v826 = vadd.f32 %v824, %v825
          %v827 = vsel %vm712, %v790, 0.0
          %v828 = vadd.f32 %v826, %v827
          %v829 = vsel %vm712, %v791, 0.0
          %v830 = vadd.f32 %v828, %v829
          %v831 = vsel %vm712, %v792, 0.0
          %v832 = vadd.f32 %v830, %v831
          %v833 = vsel %vm712, %v793, 0.0
          %v834 = vadd.f32 %v832, %v833
          %v835 = vsel %vm712, %v794, 0.0
          %v836 = vadd.f32 %v834, %v835
          %v837 = vsel %vm712, %v795, 0.0
          %v838 = vadd.f32 %v836, %v837
          %v839 = vsel %vm712, %v796, 0.0
          %v840 = vadd.f32 %v838, %v839
          %v841 = vsel %vm712, %v797, 0.0
          %v842 = vadd.f32 %v840, %v841
          %v843 = vsel %vm712, %v798, 0.0
          %v844 = vadd.f32 %v842, %v843
          %v845 = vsel %vm712, %v799, 0.0
          %v846 = vadd.f32 %v844, %v845
          %v847 = vsel %vm712, %v800, 0.0
          %v848 = vadd.f32 %v846, %v847
          %v849 = vsel %vm712, %v801, 0.0
          %v850 = vadd.f32 %v848, %v849
          %v851 = vsel %vm712, %v802, 0.0
          %v852 = vadd.f32 %v850, %v851
          %v853 = vsel %vm712, %v803, 0.0
          %v854 = vadd.f32 %v852, %v853
          %v855 = vsel %vm712, %v804, 0.0
          %v856 = vadd.f32 %v854, %v855
          %v857 = vsel %vm712, %v805, 0.0
          %v858 = vadd.f32 %v856, %v857
          %v859 = vsel %vm712, %v806, 0.0
          %v860 = vadd.f32 %v858, %v859
          %v861 = vsel %vm712, %v807, 0.0
          %v862 = vadd.f32 %v860, %v861
          %v863 = vsel %vm712, %v808, 0.0
          %v864 = vadd.f32 %v862, %v863
          %v865 = vsel %vm712, %v809, 0.0
          %v866 = vadd.f32 %v864, %v865
          %v867 = vsel %vm712, %v810, 0.0
          %v868 = vadd.f32 %v866, %v867
          %v869 = vsel %vm712, %v811, 0.0
          %v870 = vadd.f32 %v868, %v869
          %v871 = vsel %vm712, %v812, 0.0
          %v872 = vadd.f32 %v870, %v871
          %v873 = vsel %vm712, %v813, 0.0
          %v874 = vadd.f32 %v872, %v873
          %v875 = vsel %vm712, %v814, 0.0
          %v876 = vadd.f32 %v874, %v875
          %v877 = vsel %vm712, %v815, 0.0
          %v878 = vadd.f32 %v876, %v877
          %v879 = vrot.slane %v878, 4
          %v880 = vadd.f32 %v878, %v879
          %v881 = vrot.slane %v880, 2
          %v882 = vadd.f32 %v880, %v881
          %v883 = vrot.slane %v882, 1
          %v884 = vadd.f32 %v882, %v883
          %885 = vst.msk [vmem:[%s267] sm:$0x1] %vm782, %v884
        $region40: #{tpu_custom_call.1} parent=27 // pred_fallthru
          _
        %s886 = smul.u32 32, %s27
        %p887 = scmp.lt.s32.totalorder %s886, 63
        %s888 = scalar_select %p887, %s886, 63
        %p889 = scmp.lt.s32.totalorder %s28, 0
        %s890 = scalar_select %p889, %s28, 0
        %s891 = sadd.s32 %s890, %s888
        %s892 = smul.addr %s891, 8
        %s893 = scalar_lea.vmem %s2, %s892
        %s894 = sand.u32 %s135, 1
        %s895 = scalar_lea.sflag [#allocation3], %s894
        %s896 = sand.u32 %s135, 1
        %s897 = scalar_lea.vmem [#allocation2], %s896
        %s898 = sand.u32 %s163, 1
        %s899 = scalar_lea.sflag [#allocation5], %s898
        %s900 = sand.u32 %s163, 1
        %s901 = scalar_lea.vmem [#allocation4], %s900
        // Predicated region
        $region41: #{tpu_custom_call.1} parent=27 // pred_check
          %p902 = pneg %p117
        $region42: #{tpu_custom_call.1} parent=27 // pred_check_branch
          %904 = sbr.rel (%p902) target = $region44
        $region43: #{tpu_custom_call.1} parent=27 // pred_region
          %s905 = smul.u32 32, %s27
        $region44: #{tpu_custom_call.1} parent=27 // pred_fallthru
          _
        // Predicated region
        $region45: #{tpu_custom_call.1} parent=27 // pred_check
          %p906 = pneg %p145
        $region46: #{tpu_custom_call.1} parent=27 // pred_check_branch
          %908 = sbr.rel (%p906) target = $region48
        $region47: #{tpu_custom_call.1} parent=27 // pred_region
          %910 = vsyncadd %s895, 0
          %s911 = sadd.s32 %s28, %s27
          %s912 = scalar_lea.hbm %s3, %s911
          %s914 = sshll.u32 %s897, 4
          %s915 = int_to_ptr.vmem [resolvable:$true] %s914
          %s916 = sshll.u32 %s912, 4
          %s917 = int_to_ptr.hbm [resolvable:$true] %s916
          %919 = dma.vmem_to_hbm [thread:$0]  %s915, 16, %s917, %s895
        $region48: #{tpu_custom_call.1} parent=27 // pred_fallthru
          _
        // Predicated region
        $region49: #{tpu_custom_call.1} parent=27 // pred_check
          %p920 = pneg %p173
        $region50: #{tpu_custom_call.1} parent=27 // pred_check_branch
          %922 = sbr.rel (%p920) target = $region52
        $region51: #{tpu_custom_call.1} parent=27 // pred_region
          %924 = vsyncadd %s899, 0
          %s925 = sadd.s32 %s28, %s27
          %s926 = scalar_lea.hbm %s4, %s925
          %s928 = sshll.u32 %s901, 4
          %s929 = int_to_ptr.vmem [resolvable:$true] %s928
          %s930 = sshll.u32 %s926, 4
          %s931 = int_to_ptr.hbm [resolvable:$true] %s930
          %933 = dma.vmem_to_hbm [thread:$0]  %s929, 16, %s931, %s899
        $region52: #{tpu_custom_call.1} parent=27 // pred_fallthru
          _
      $region28: #{tpu_custom_call.1} parent=5 // pred_fallthru
        _
      %p934 = scmp.le.s32.totalorder 2, %s17
      // Predicated region
      $region53: #{tpu_custom_call.1} parent=5 // pred_check
        %p935 = pneg %p934
      $region54: #{tpu_custom_call.1} parent=5 // pred_check_branch
        %937 = sbr.rel (%p935) target = $region56
      $region55: #{tpu_custom_call.1} parent=5 // pred_region
        %s938 = ssub.s32 %s17, 2
        // Predicated region
        $region57: #{tpu_custom_call.1} parent=55 // pred_check
          %p939 = pneg %p123
        $region58: #{tpu_custom_call.1} parent=55 // pred_check_branch
          %941 = sbr.rel (%p939) target = $region60
        $region59: #{tpu_custom_call.1} parent=55 // pred_region
          %s942 = smul.u32 32, %s30
          %p943 = scmp.lt.s32.totalorder %s942, 63
          %s944 = scalar_select %p943, %s942, 63
          %p945 = scmp.lt.s32.totalorder %s31, 0
          %s946 = scalar_select %p945, %s31, 0
          %s947 = sadd.s32 %s946, %s944
          %s948 = smul.addr %s947, 8
          %s949 = scalar_lea.vmem %s2, %s948
        $region60: #{tpu_custom_call.1} parent=55 // pred_fallthru
          _
        // Predicated region
        $region61: #{tpu_custom_call.1} parent=55 // pred_check
          %p950 = pneg %p151
        $region62: #{tpu_custom_call.1} parent=55 // pred_check_branch
          %952 = sbr.rel (%p950) target = $region64
        $region63: #{tpu_custom_call.1} parent=55 // pred_region
          %s953 = sand.u32 %s136, 1
          %s954 = scalar_lea.sflag [#allocation3], %s953
          %s955 = sand.u32 %s136, 1
          %s956 = scalar_lea.vmem [#allocation2], %s955
          %958 = dma.done %s954, 16
        $region64: #{tpu_custom_call.1} parent=55 // pred_fallthru
          _
        // Predicated region
        $region65: #{tpu_custom_call.1} parent=55 // pred_check
          %p959 = pneg %p179
        $region66: #{tpu_custom_call.1} parent=55 // pred_check_branch
          %961 = sbr.rel (%p959) target = $region68
        $region67: #{tpu_custom_call.1} parent=55 // pred_region
          %s962 = sand.u32 %s164, 1
          %s963 = scalar_lea.sflag [#allocation5], %s962
          %s964 = sand.u32 %s164, 1
          %s965 = scalar_lea.vmem [#allocation4], %s964
          %967 = dma.done %s963, 16
        $region68: #{tpu_custom_call.1} parent=55 // pred_fallthru
          _
      $region56: #{tpu_custom_call.1} parent=5 // pred_fallthru
        _
    $region6: #{tpu_custom_call.1} parent=1 // loop_footer
      %s21 = sadd.s32 1, %s17
    $region7: #{tpu_custom_call.1} parent=1 // loop_footer_branch
      %16 = sbr.rel target = $region3
    $region8: #{tpu_custom_call.1} parent=1 // loop_exit
      _
    %968 = vsyncpa [#allocation3], 1
    %s969 = scalar_lea.sflag [#allocation3], 1
    %970 = vsyncpa %s969, 1
    %971 = vsyncpa [#allocation5], 1
    %s972 = scalar_lea.sflag [#allocation5], 1
    %973 = vsyncpa %s972, 1

</llo_original>
